<compile_context>
chip_gen: v6e
topology: v6e:2x2x1
jax: 0.10.0
libtpu: 0.0.40
codegen_flags: <defaults>
</compile_context>

<pallas_src>
import functools
import math

import jax
import jax.numpy as jnp
from jax.experimental import pallas as pl
from jax.experimental.pallas import tpu as pltpu

DO_NUM = 0.3              # dropout prob, matches `do_num` in the PyTorch module
F_IN = 28 * 28            # 784
F_PAD = 896               # 7 * 128 (zero-padded K dim)
HID = 64
OUT = 10
OUT_PAD = 128             # lane-dense padded logits width


def _resmlp_kernel(training, *refs):
    """One batch tile of the forward pass; everything resident in VMEM."""
    if training:
        (x_ref, u_ref, w1_ref, b1_ref, w2_ref, b2_ref, w3_ref, b3_ref,
         o_ref) = refs
    else:
        (x_ref, w1_ref, b1_ref, w2_ref, b2_ref, w3_ref, b3_ref, o_ref) = refs
        u_ref = None

    x = x_ref[...]                                                # [TB, 896]

    # h1 = relu(x @ W1 + b1)
    h1 = jnp.dot(x, w1_ref[...], preferred_element_type=jnp.float32)
    h1 = jnp.maximum(h1 + b1_ref[...], 0.0)                       # [TB, 64]

    # h2 = relu(h1 @ W2 + b2)
    h2 = jnp.dot(h1, w2_ref[...], preferred_element_type=jnp.float32)
    h2 = jnp.maximum(h2 + b2_ref[...], 0.0)                       # [TB, 64]

    # residual add, then dropout
    h = h2 + h1                                                   # [TB, 64]
    if training:
        # Inverted dropout: keep with prob 1-p, scale kept values by 1/(1-p).
        # TODO(synk): the TPU hardware PRNG (pltpu.prng_seed/prng_random_bits)
        # would generate the mask in-kernel without this extra input, but it
        # has no CPU-interpret lowering, so uniform samples are drawn host-side
        # with jax.random and thresholded here (semantics are identical; bits
        # cannot match torch's RNG either way).
        keep = u_ref[...] >= DO_NUM
        h = jnp.where(keep, h * (1.0 / (1.0 - DO_NUM)), 0.0)

    # logits (lane-dense, 128 wide; real logits live in the first 10 lanes)
    logits = jnp.dot(h, w3_ref[...], preferred_element_type=jnp.float32)
    o_ref[...] = logits + b3_ref[...]                             # [TB, 128]


def resnet_forward(params, x, *, key=None, training=True, tb=1024):
    """params: dict of w1,b1,w2,b2,w3,b3 (already padded / [in, out]).

    x: [B, 784] float32.  Returns [B, 10] float32 logits.
    """
    B = x.shape[0]

    # Zero-pad feature dim 784 -> 896 (zeros contribute nothing to the matmul).
    xp = jnp.pad(x.astype(jnp.float32), ((0, 0), (0, F_PAD - F_IN)))

    # Batch tile: multiple of 8 (sublane), default 1024 (multiple of 256/128).
    if B >= tb:
        TB = tb
    else:
        TB = max(8, ((B + 7) // 8) * 8)
    PB = pl.cdiv(B, TB) * TB
    if PB != B:
        xp = jnp.pad(xp, ((0, PB - B), (0, 0)))

    args = [xp]
    in_specs = [pl.BlockSpec((TB, F_PAD), lambda i: (i, 0))]

    if training:
        if key is None:
            key = jax.random.PRNGKey(0)
        u = jax.random.uniform(key, (PB, HID), dtype=jnp.float32)
        args.append(u)
        in_specs.append(pl.BlockSpec((TB, HID), lambda i: (i, 0)))

    # Weights/biases: constant index_map -> stay resident in VMEM across grid.
    args += [params["w1"], params["b1"],
             params["w2"], params["b2"],
             params["w3"], params["b3"]]
    in_specs += [
        pl.BlockSpec((F_PAD, HID), lambda i: (0, 0)),   # w1  [896, 64]
        pl.BlockSpec((1, HID), lambda i: (0, 0)),       # b1  [1, 64]
        pl.BlockSpec((HID, HID), lambda i: (0, 0)),     # w2  [64, 64]
        pl.BlockSpec((1, HID), lambda i: (0, 0)),       # b2  [1, 64]
        pl.BlockSpec((HID, OUT_PAD), lambda i: (0, 0)),  # w3 [64, 128]
        pl.BlockSpec((1, OUT_PAD), lambda i: (0, 0)),   # b3  [1, 128]
    ]

    kernel = functools.partial(_resmlp_kernel, training)

    out = pl.pallas_call(
        kernel,
        out_shape=jax.ShapeDtypeStruct((PB, OUT_PAD), jnp.float32),
        grid=(PB // TB,),
        in_specs=in_specs,
        out_specs=pl.BlockSpec((TB, OUT_PAD), lambda i: (i, 0)),
        compiler_params=pltpu.CompilerParams(
            dimension_semantics=("parallel",)),
    )(*args)

    return out[:B, :OUT]


def init_params(key):
    """Deterministic init mimicking torch.nn.Linear (U(-1/sqrt(fan_in), ..)),
    with layout/padding expected by the kernel."""
    def linear(key, fan_in, fan_out):
        kw, kb = jax.random.split(key)
        bound = 1.0 / math.sqrt(fan_in)
        w = jax.random.uniform(kw, (fan_in, fan_out), jnp.float32, -bound, bound)
        b = jax.random.uniform(kb, (1, fan_out), jnp.float32, -bound, bound)
        return w, b

    k1, k2, k3 = jax.random.split(key, 3)
    w1, b1 = linear(k1, F_IN, HID)
    w2, b2 = linear(k2, HID, HID)
    w3, b3 = linear(k3, HID, OUT)

    # Pad K dim of W1 (784 -> 896) and output lanes of W3/b3 (10 -> 128).
    w1 = jnp.pad(w1, ((0, F_PAD - F_IN), (0, 0)))
    w3 = jnp.pad(w3, ((0, 0), (0, OUT_PAD - OUT)))
    b3 = jnp.pad(b3, ((0, 0), (0, OUT_PAD - OUT)))
    return {"w1": w1, "b1": b1, "w2": w2, "b2": b2, "w3": w3, "b3": b3}


def _reference_eval(params, x):
    """Plain-JAX eval-mode forward for a sanity check."""
    xp = jnp.pad(x, ((0, 0), (0, F_PAD - F_IN)))
    h1 = jnp.maximum(xp @ params["w1"] + params["b1"], 0.0)
    h2 = jnp.maximum(h1 @ params["w2"] + params["b2"], 0.0)
    logits = (h2 + h1) @ params["w3"] + params["b3"]
    return logits[:, :OUT]


if __name__ == "__main__":
    key = jax.random.PRNGKey(0)
    pkey, xkey, dkey = jax.random.split(key, 3)

    params = init_params(pkey)
    B = 8
    x = jax.random.normal(xkey, (B, F_IN), dtype=jnp.float32)

    # training-mode forward (dropout active)
    logits = jax.block_until_ready(
        resnet_forward(params, x, key=dkey, training=True))
    assert logits.shape == (B, OUT) and logits.dtype == jnp.float32

    # eval-mode forward (dropout = identity) + numerical sanity check
    logits_eval = jax.block_until_ready(
        resnet_forward(params, x, training=False))
    assert logits_eval.shape == (B, OUT)
    ref = _reference_eval(params, x)
    assert jnp.allclose(logits_eval, ref, rtol=5e-2, atol=5e-2), \
        "eval-mode kernel output diverges from reference"

    print("KERNEL_OK")
</pallas_src>

<mosaic_0001>
module attributes {stable_mosaic.version = 11 : i64} {
  func.func @_resmlp_kernel(%arg0: i32, %arg1: memref<8x896xf32, #tpu.memory_space<vmem>>, %arg2: memref<8x64xf32, #tpu.memory_space<vmem>>, %arg3: memref<896x64xf32, #tpu.memory_space<vmem>>, %arg4: memref<1x64xf32, #tpu.memory_space<vmem>>, %arg5: memref<64x64xf32, #tpu.memory_space<vmem>>, %arg6: memref<1x64xf32, #tpu.memory_space<vmem>>, %arg7: memref<64x128xf32, #tpu.memory_space<vmem>>, %arg8: memref<1x128xf32, #tpu.memory_space<vmem>>, %arg9: memref<8x128xf32, #tpu.memory_space<vmem>>) attributes {dimension_semantics = [#tpu.dimension_semantics<parallel>], iteration_bounds = array<i64: 1>, scalar_prefetch = 0 : i64, scratch_operands = 0 : i64, tpu.core_type = #tpu.core_type<tc>, window_params = [{transform_indices = @transform_0, window_bounds = array<i64: 8, 896>}, {transform_indices = @transform_1, window_bounds = array<i64: 8, 64>}, {pipeline_mode = #tpu.pipeline_mode<synchronous>, transform_indices = @transform_2, window_bounds = array<i64: 896, 64>}, {pipeline_mode = #tpu.pipeline_mode<synchronous>, transform_indices = @transform_3, window_bounds = array<i64: 1, 64>}, {pipeline_mode = #tpu.pipeline_mode<synchronous>, transform_indices = @transform_4, window_bounds = array<i64: 64, 64>}, {pipeline_mode = #tpu.pipeline_mode<synchronous>, transform_indices = @transform_5, window_bounds = array<i64: 1, 64>}, {pipeline_mode = #tpu.pipeline_mode<synchronous>, transform_indices = @transform_6, window_bounds = array<i64: 64, 128>}, {pipeline_mode = #tpu.pipeline_mode<synchronous>, transform_indices = @transform_7, window_bounds = array<i64: 1, 128>}, {transform_indices = @transform_8, window_bounds = array<i64: 8, 128>}]} {
    %c0 = arith.constant 0 : index
    %c0_0 = arith.constant 0 : index
    %0 = vector.load %arg1[%c0, %c0_0] : memref<8x896xf32, #tpu.memory_space<vmem>>, vector<8x896xf32>
    %c0_1 = arith.constant 0 : index
    %c0_2 = arith.constant 0 : index
    %1 = vector.load %arg3[%c0_1, %c0_2] : memref<896x64xf32, #tpu.memory_space<vmem>>, vector<896x64xf32>
    %cst = arith.constant dense<0.000000e+00> : vector<8x64xf32>
    %2 = tpu.matmul %0, %1, %cst {dimension_numbers = #tpu.dot_dimension_numbers<[1], [0], [0], [1], [0, 0, 1, 1], [], []>} : vector<8x896xf32>, vector<896x64xf32>, vector<8x64xf32> -> vector<8x64xf32>
    %c0_3 = arith.constant 0 : index
    %c0_4 = arith.constant 0 : index
    %3 = vector.load %arg4[%c0_3, %c0_4] : memref<1x64xf32, #tpu.memory_space<vmem>>, vector<1x64xf32>
    %4 = vector.broadcast %3 : vector<1x64xf32> to vector<8x64xf32>
    %5 = arith.addf %2, %4 : vector<8x64xf32>
    %cst_5 = arith.constant 0.000000e+00 : f32
    %6 = vector.broadcast %cst_5 : f32 to vector<8x64xf32>
    %7 = arith.maximumf %5, %6 : vector<8x64xf32>
    %c0_6 = arith.constant 0 : index
    %c0_7 = arith.constant 0 : index
    %8 = vector.load %arg5[%c0_6, %c0_7] : memref<64x64xf32, #tpu.memory_space<vmem>>, vector<64x64xf32>
    %cst_8 = arith.constant dense<0.000000e+00> : vector<8x64xf32>
    %9 = tpu.matmul %7, %8, %cst_8 {dimension_numbers = #tpu.dot_dimension_numbers<[1], [0], [0], [1], [0, 0, 1, 1], [], []>} : vector<8x64xf32>, vector<64x64xf32>, vector<8x64xf32> -> vector<8x64xf32>
    %c0_9 = arith.constant 0 : index
    %c0_10 = arith.constant 0 : index
    %10 = vector.load %arg6[%c0_9, %c0_10] : memref<1x64xf32, #tpu.memory_space<vmem>>, vector<1x64xf32>
    %11 = vector.broadcast %10 : vector<1x64xf32> to vector<8x64xf32>
    %12 = arith.addf %9, %11 : vector<8x64xf32>
    %cst_11 = arith.constant 0.000000e+00 : f32
    %13 = vector.broadcast %cst_11 : f32 to vector<8x64xf32>
    %14 = arith.maximumf %12, %13 : vector<8x64xf32>
    %15 = arith.addf %14, %7 : vector<8x64xf32>
    %c0_12 = arith.constant 0 : index
    %c0_13 = arith.constant 0 : index
    %16 = vector.load %arg2[%c0_12, %c0_13] : memref<8x64xf32, #tpu.memory_space<vmem>>, vector<8x64xf32>
    %cst_14 = arith.constant 3.000000e-01 : f32
    %17 = vector.broadcast %cst_14 : f32 to vector<8x64xf32>
    %18 = arith.cmpf oge, %16, %17 : vector<8x64xf32>
    %cst_15 = arith.constant 1.42857146 : f32
    %19 = vector.broadcast %cst_15 : f32 to vector<8x64xf32>
    %20 = arith.mulf %15, %19 : vector<8x64xf32>
    %cst_16 = arith.constant 0.000000e+00 : f32
    %21 = vector.broadcast %cst_16 : f32 to vector<8x64xf32>
    %22 = arith.select %18, %20, %21 : vector<8x64xi1>, vector<8x64xf32>
    %c0_17 = arith.constant 0 : index
    %c0_18 = arith.constant 0 : index
    %23 = vector.load %arg7[%c0_17, %c0_18] : memref<64x128xf32, #tpu.memory_space<vmem>>, vector<64x128xf32>
    %cst_19 = arith.constant dense<0.000000e+00> : vector<8x128xf32>
    %24 = tpu.matmul %22, %23, %cst_19 {dimension_numbers = #tpu.dot_dimension_numbers<[1], [0], [0], [1], [0, 0, 1, 1], [], []>} : vector<8x64xf32>, vector<64x128xf32>, vector<8x128xf32> -> vector<8x128xf32>
    %c0_20 = arith.constant 0 : index
    %c0_21 = arith.constant 0 : index
    %25 = vector.load %arg8[%c0_20, %c0_21] : memref<1x128xf32, #tpu.memory_space<vmem>>, vector<1x128xf32>
    %26 = vector.broadcast %25 : vector<1x128xf32> to vector<8x128xf32>
    %27 = arith.addf %24, %26 : vector<8x128xf32>
    %c0_22 = arith.constant 0 : index
    %c0_23 = arith.constant 0 : index
    %28 = vector.load %arg9[%c0_22, %c0_23] : memref<8x128xf32, #tpu.memory_space<vmem>>, vector<8x128xf32>
    tpu.vector_store %arg9[%c0_22, %c0_23], %27 {strides = array<i32>} : memref<8x128xf32, #tpu.memory_space<vmem>>, vector<8x128xf32>,
    return
  }
  func.func @transform_0(%arg0: i32) -> (i32, i32) {
    %c0_i32 = arith.constant 0 : i32
    %c0_i32_0 = arith.constant 0 : i32
    return %arg0, %c0_i32 : i32, i32
  }
  func.func @transform_1(%arg0: i32) -> (i32, i32) {
    %c0_i32 = arith.constant 0 : i32
    %c0_i32_0 = arith.constant 0 : i32
    return %arg0, %c0_i32 : i32, i32
  }
  func.func @transform_2(%arg0: i32) -> (i32, i32) {
    %c0_i32 = arith.constant 0 : i32
    %c0_i32_0 = arith.constant 0 : i32
    %c0_i32_1 = arith.constant 0 : i32
    return %c0_i32, %c0_i32_0 : i32, i32
  }
  func.func @transform_3(%arg0: i32) -> (i32, i32) {
    %c0_i32 = arith.constant 0 : i32
    %c0_i32_0 = arith.constant 0 : i32
    %c0_i32_1 = arith.constant 0 : i32
    return %c0_i32, %c0_i32_0 : i32, i32
  }
  func.func @transform_4(%arg0: i32) -> (i32, i32) {
    %c0_i32 = arith.constant 0 : i32
    %c0_i32_0 = arith.constant 0 : i32
    %c0_i32_1 = arith.constant 0 : i32
    return %c0_i32, %c0_i32_0 : i32, i32
  }
  func.func @transform_5(%arg0: i32) -> (i32, i32) {
    %c0_i32 = arith.constant 0 : i32
    %c0_i32_0 = arith.constant 0 : i32
    %c0_i32_1 = arith.constant 0 : i32
    return %c0_i32, %c0_i32_0 : i32, i32
  }
  func.func @transform_6(%arg0: i32) -> (i32, i32) {
    %c0_i32 = arith.constant 0 : i32
    %c0_i32_0 = arith.constant 0 : i32
    %c0_i32_1 = arith.constant 0 : i32
    return %c0_i32, %c0_i32_0 : i32, i32
  }
  func.func @transform_7(%arg0: i32) -> (i32, i32) {
    %c0_i32 = arith.constant 0 : i32
    %c0_i32_0 = arith.constant 0 : i32
    %c0_i32_1 = arith.constant 0 : i32
    return %c0_i32, %c0_i32_0 : i32, i32
  }
  func.func @transform_8(%arg0: i32) -> (i32, i32) {
    %c0_i32 = arith.constant 0 : i32
    %c0_i32_0 = arith.constant 0 : i32
    return %arg0, %c0_i32 : i32, i32
  }
}

</mosaic_0001>

<llo_original>
// kernel: tpu_custom_call.1
$region0: #{tpu_custom_call.1}
  #allocation0 [shape = 'u32[]', space=smem, size = 0x4, offset = 0x4, fixed_abs, tag = 'smem constant byte address 0x4 - core index']
  #allocation1 [shape = 'u32[144,128]{1,0:T(1,128)}', space=vmem, size = 0x12000, scoped, tag = 'internal scratch']
  %s0 = inlined_call_operand.vmem [shape: f32[8,896], index: 0, kind: input, shape index: {}]
  %s1 = inlined_call_operand.vmem [shape: f32[8,64], index: 1, kind: input, shape index: {}]
  %s2 = inlined_call_operand.vmem [shape: f32[896,64], index: 2, kind: input, shape index: {}]
  %s3 = inlined_call_operand.vmem [shape: f32[1,64], index: 3, kind: input, shape index: {}]
  %s4 = inlined_call_operand.vmem [shape: f32[64,64], index: 4, kind: input, shape index: {}]
  %s5 = inlined_call_operand.vmem [shape: f32[1,64], index: 5, kind: input, shape index: {}]
  %s6 = inlined_call_operand.vmem [shape: f32[64,128], index: 6, kind: input, shape index: {}]
  %s7 = inlined_call_operand.vmem [shape: f32[1,128], index: 7, kind: input, shape index: {}]
  %s8 = inlined_call_operand.hbm [shape: f32[8,128], index: 8, kind: output, shape index: {}]
  %s9 = sld [smem:[#allocation0]]
  $region42: #{tpu_custom_call.1} parent=0
    _
  %s11 = ssub.s32 1, %s9
  %s12 = scalar_select 0, %s11, %s9
  $region1: #{tpu_custom_call.1} parent=0
    #allocation2 [shape = 'u8[4096]{0}', space=vmem, size = 0x1000, scoped, tag = 'output window, operand 0, single buffered']
    #allocation3 [shape = 's32[1]{0}', space=sflag, size = 0x4, scoped, tag = 'scoped memory for tpu_custom_call.1']
    %13 = vsyncpa [#allocation3], 0
    // Predicated region
    $region2: #{tpu_custom_call.1} parent=1 // pred_check
      _
    $region3: #{tpu_custom_call.1} parent=1 // pred_check_branch
      %15 = sbr.rel (0) target = $region5
    $region4: #{tpu_custom_call.1} parent=1 // pred_region
      _
    $region5: #{tpu_custom_call.1} parent=1 // pred_fallthru
      _
    // Predicated region
    $region6: #{tpu_custom_call.1} parent=1 // pred_check
      _
    $region7: #{tpu_custom_call.1} parent=1 // pred_check_branch
      %17 = sbr.rel (0) target = $region9
    $region8: #{tpu_custom_call.1} parent=1 // pred_region
      _
    $region9: #{tpu_custom_call.1} parent=1 // pred_fallthru
      _
    // Predicated region
    $region10: #{tpu_custom_call.1} parent=1 // pred_check
      _
    $region11: #{tpu_custom_call.1} parent=1 // pred_check_branch
      %19 = sbr.rel (0) target = $region13
    $region12: #{tpu_custom_call.1} parent=1 // pred_region
      _
    $region13: #{tpu_custom_call.1} parent=1 // pred_fallthru
      _
    // Predicated region
    $region14: #{tpu_custom_call.1} parent=1 // pred_check
      _
    $region15: #{tpu_custom_call.1} parent=1 // pred_check_branch
      %21 = sbr.rel (0) target = $region17
    $region16: #{tpu_custom_call.1} parent=1 // pred_region
      _
    $region17: #{tpu_custom_call.1} parent=1 // pred_fallthru
      _
    // Predicated region
    $region18: #{tpu_custom_call.1} parent=1 // pred_check
      _
    $region19: #{tpu_custom_call.1} parent=1 // pred_check_branch
      %23 = sbr.rel (0) target = $region21
    $region20: #{tpu_custom_call.1} parent=1 // pred_region
      _
    $region21: #{tpu_custom_call.1} parent=1 // pred_fallthru
      _
    // Predicated region
    $region22: #{tpu_custom_call.1} parent=1 // pred_check
      _
    $region23: #{tpu_custom_call.1} parent=1 // pred_check_branch
      %25 = sbr.rel (0) target = $region25
    $region24: #{tpu_custom_call.1} parent=1 // pred_region
      _
    $region25: #{tpu_custom_call.1} parent=1 // pred_fallthru
      _
    // Predicated region
    $region26: #{tpu_custom_call.1} parent=1 // pred_check
      _
    $region27: #{tpu_custom_call.1} parent=1 // pred_check_branch
      %27 = sbr.rel (0) target = $region29
    $region28: #{tpu_custom_call.1} parent=1 // pred_region
      _
    $region29: #{tpu_custom_call.1} parent=1 // pred_fallthru
      _
    // Predicated region
    $region30: #{tpu_custom_call.1} parent=1 // pred_check
      _
    $region31: #{tpu_custom_call.1} parent=1 // pred_check_branch
      %29 = sbr.rel (0) target = $region33
    $region32: #{tpu_custom_call.1} parent=1 // pred_region
      _
    $region33: #{tpu_custom_call.1} parent=1 // pred_fallthru
      _
    %v30 = vld [vmem:[%s0] sm:$0xff]
    %v31 = vld [vmem:[%s0 + $0x8] sm:$0xff]
    %v32 = vld [vmem:[%s0 + $0x10] sm:$0xff]
    %v33 = vld [vmem:[%s0 + $0x18] sm:$0xff]
    %v34 = vld [vmem:[%s0 + $0x20] sm:$0xff]
    %v35 = vld [vmem:[%s0 + $0x28] sm:$0xff]
    %v36 = vld [vmem:[%s0 + $0x30] sm:$0xff]
    %v37 = vld [vmem:[%s2] sm:$0xff]
    %v38 = vld [vmem:[%s2 + $0x8] sm:$0xff]
    %v39 = vld [vmem:[%s2 + $0x10] sm:$0xff]
    %v40 = vld [vmem:[%s2 + $0x18] sm:$0xff]
    %v41 = vld [vmem:[%s2 + $0x20] sm:$0xff]
    %v42 = vld [vmem:[%s2 + $0x28] sm:$0xff]
    %v43 = vld [vmem:[%s2 + $0x30] sm:$0xff]
    %v44 = vld [vmem:[%s2 + $0x38] sm:$0xff]
    %v45 = vld [vmem:[%s2 + $0x40] sm:$0xff]
    %v46 = vld [vmem:[%s2 + $0x48] sm:$0xff]
    %v47 = vld [vmem:[%s2 + $0x50] sm:$0xff]
    %v48 = vld [vmem:[%s2 + $0x58] sm:$0xff]
    %v49 = vld [vmem:[%s2 + $0x60] sm:$0xff]
    %v50 = vld [vmem:[%s2 + $0x68] sm:$0xff]
    %v51 = vld [vmem:[%s2 + $0x70] sm:$0xff]
    %v52 = vld [vmem:[%s2 + $0x78] sm:$0xff]
    %v53 = vld [vmem:[%s2 + $0x80] sm:$0xff]
    %v54 = vld [vmem:[%s2 + $0x88] sm:$0xff]
    %v55 = vld [vmem:[%s2 + $0x90] sm:$0xff]
    %v56 = vld [vmem:[%s2 + $0x98] sm:$0xff]
    %v57 = vld [vmem:[%s2 + $0xa0] sm:$0xff]
    %v58 = vld [vmem:[%s2 + $0xa8] sm:$0xff]
    %v59 = vld [vmem:[%s2 + $0xb0] sm:$0xff]
    %v60 = vld [vmem:[%s2 + $0xb8] sm:$0xff]
    %v61 = vld [vmem:[%s2 + $0xc0] sm:$0xff]
    %v62 = vld [vmem:[%s2 + $0xc8] sm:$0xff]
    %v63 = vld [vmem:[%s2 + $0xd0] sm:$0xff]
    %v64 = vld [vmem:[%s2 + $0xd8] sm:$0xff]
    %v65 = vld [vmem:[%s2 + $0xe0] sm:$0xff]
    %v66 = vld [vmem:[%s2 + $0xe8] sm:$0xff]
    %v67 = vld [vmem:[%s2 + $0xf0] sm:$0xff]
    %v68 = vld [vmem:[%s2 + $0xf8] sm:$0xff]
    %v69 = vld [vmem:[%s2 + $0x100] sm:$0xff]
    %v70 = vld [vmem:[%s2 + $0x108] sm:$0xff]
    %v71 = vld [vmem:[%s2 + $0x110] sm:$0xff]
    %v72 = vld [vmem:[%s2 + $0x118] sm:$0xff]
    %v73 = vld [vmem:[%s2 + $0x120] sm:$0xff]
    %v74 = vld [vmem:[%s2 + $0x128] sm:$0xff]
    %v75 = vld [vmem:[%s2 + $0x130] sm:$0xff]
    %v76 = vld [vmem:[%s2 + $0x138] sm:$0xff]
    %v77 = vld [vmem:[%s2 + $0x140] sm:$0xff]
    %v78 = vld [vmem:[%s2 + $0x148] sm:$0xff]
    %v79 = vld [vmem:[%s2 + $0x150] sm:$0xff]
    %v80 = vld [vmem:[%s2 + $0x158] sm:$0xff]
    %v81 = vld [vmem:[%s2 + $0x160] sm:$0xff]
    %v82 = vld [vmem:[%s2 + $0x168] sm:$0xff]
    %v83 = vld [vmem:[%s2 + $0x170] sm:$0xff]
    %v84 = vld [vmem:[%s2 + $0x178] sm:$0xff]
    %v85 = vld [vmem:[%s2 + $0x180] sm:$0xff]
    %v86 = vld [vmem:[%s2 + $0x188] sm:$0xff]
    %v87 = vld [vmem:[%s2 + $0x190] sm:$0xff]
    %v88 = vld [vmem:[%s2 + $0x198] sm:$0xff]
    %v89 = vld [vmem:[%s2 + $0x1a0] sm:$0xff]
    %v90 = vld [vmem:[%s2 + $0x1a8] sm:$0xff]
    %v91 = vld [vmem:[%s2 + $0x1b0] sm:$0xff]
    %v92 = vld [vmem:[%s2 + $0x1b8] sm:$0xff]
    %v93 = vld [vmem:[%s2 + $0x1c0] sm:$0xff]
    %v94 = vld [vmem:[%s2 + $0x1c8] sm:$0xff]
    %v95 = vld [vmem:[%s2 + $0x1d0] sm:$0xff]
    %v96 = vld [vmem:[%s2 + $0x1d8] sm:$0xff]
    %v97 = vld [vmem:[%s2 + $0x1e0] sm:$0xff]
    %v98 = vld [vmem:[%s2 + $0x1e8] sm:$0xff]
    %v99 = vld [vmem:[%s2 + $0x1f0] sm:$0xff]
    %v100 = vld [vmem:[%s2 + $0x1f8] sm:$0xff]
    %v101 = vld [vmem:[%s2 + $0x200] sm:$0xff]
    %v102 = vld [vmem:[%s2 + $0x208] sm:$0xff]
    %v103 = vld [vmem:[%s2 + $0x210] sm:$0xff]
    %v104 = vld [vmem:[%s2 + $0x218] sm:$0xff]
    %v105 = vld [vmem:[%s2 + $0x220] sm:$0xff]
    %v106 = vld [vmem:[%s2 + $0x228] sm:$0xff]
    %v107 = vld [vmem:[%s2 + $0x230] sm:$0xff]
    %v108 = vld [vmem:[%s2 + $0x238] sm:$0xff]
    %v109 = vld [vmem:[%s2 + $0x240] sm:$0xff]
    %v110 = vld [vmem:[%s2 + $0x248] sm:$0xff]
    %v111 = vld [vmem:[%s2 + $0x250] sm:$0xff]
    %v112 = vld [vmem:[%s2 + $0x258] sm:$0xff]
    %v113 = vld [vmem:[%s2 + $0x260] sm:$0xff]
    %v114 = vld [vmem:[%s2 + $0x268] sm:$0xff]
    %v115 = vld [vmem:[%s2 + $0x270] sm:$0xff]
    %v116 = vld [vmem:[%s2 + $0x278] sm:$0xff]
    %v117 = vld [vmem:[%s2 + $0x280] sm:$0xff]
    %v118 = vld [vmem:[%s2 + $0x288] sm:$0xff]
    %v119 = vld [vmem:[%s2 + $0x290] sm:$0xff]
    %v120 = vld [vmem:[%s2 + $0x298] sm:$0xff]
    %v121 = vld [vmem:[%s2 + $0x2a0] sm:$0xff]
    %v122 = vld [vmem:[%s2 + $0x2a8] sm:$0xff]
    %v123 = vld [vmem:[%s2 + $0x2b0] sm:$0xff]
    %v124 = vld [vmem:[%s2 + $0x2b8] sm:$0xff]
    %v125 = vld [vmem:[%s2 + $0x2c0] sm:$0xff]
    %v126 = vld [vmem:[%s2 + $0x2c8] sm:$0xff]
    %v127 = vld [vmem:[%s2 + $0x2d0] sm:$0xff]
    %v128 = vld [vmem:[%s2 + $0x2d8] sm:$0xff]
    %v129 = vld [vmem:[%s2 + $0x2e0] sm:$0xff]
    %v130 = vld [vmem:[%s2 + $0x2e8] sm:$0xff]
    %v131 = vld [vmem:[%s2 + $0x2f0] sm:$0xff]
    %v132 = vld [vmem:[%s2 + $0x2f8] sm:$0xff]
    %v133 = vld [vmem:[%s2 + $0x300] sm:$0xff]
    %v134 = vld [vmem:[%s2 + $0x308] sm:$0xff]
    %v135 = vld [vmem:[%s2 + $0x310] sm:$0xff]
    %v136 = vld [vmem:[%s2 + $0x318] sm:$0xff]
    %v137 = vld [vmem:[%s2 + $0x320] sm:$0xff]
    %v138 = vld [vmem:[%s2 + $0x328] sm:$0xff]
    %v139 = vld [vmem:[%s2 + $0x330] sm:$0xff]
    %v140 = vld [vmem:[%s2 + $0x338] sm:$0xff]
    %v141 = vld [vmem:[%s2 + $0x340] sm:$0xff]
    %v142 = vld [vmem:[%s2 + $0x348] sm:$0xff]
    %v143 = vld [vmem:[%s2 + $0x350] sm:$0xff]
    %v144 = vld [vmem:[%s2 + $0x358] sm:$0xff]
    %v145 = vld [vmem:[%s2 + $0x360] sm:$0xff]
    %v146 = vld [vmem:[%s2 + $0x368] sm:$0xff]
    %v147 = vld [vmem:[%s2 + $0x370] sm:$0xff]
    %v148 = vld [vmem:[%s2 + $0x378] sm:$0xff]
    %v149 = vld [vmem:[%s3] sm:$0x1]
    %v151 = vlaneseq
    %v152 = vshrl.u32 %v151, 7
    %v153 = vsub.s32 0, %v152
    %v154 = vrot.slane %v149, %v153
    %156 = vmatprep.subr.mxu0 0.0
    %157 = vmatpush1.msra.mxu0 %v52
    %158 = vmatprep.subr.mxu0 0.0
    %159 = vmatpush1.msra.mxu0 %v51
    %160 = vmatprep.subr.mxu0 0.0
    %161 = vmatpush1.msra.mxu0 %v50
    %162 = vmatprep.subr.mxu0 0.0
    %163 = vmatpush1.msra.mxu0 %v49
    %164 = vmatprep.subr.mxu0 0.0
    %165 = vmatpush1.msra.mxu0 %v48
    %166 = vmatprep.subr.mxu0 0.0
    %167 = vmatpush1.msra.mxu0 %v47
    %168 = vmatprep.subr.mxu0 0.0
    %169 = vmatpush1.msra.mxu0 %v46
    %170 = vmatprep.subr.mxu0 0.0
    %171 = vmatpush1.msra.mxu0 %v45
    %172 = vmatprep.subr.mxu0 0.0
    %173 = vmatpush1.msra.mxu0 %v44
    %174 = vmatprep.subr.mxu0 0.0
    %175 = vmatpush1.msra.mxu0 %v43
    %176 = vmatprep.subr.mxu0 0.0
    %177 = vmatpush1.msra.mxu0 %v42
    %178 = vmatprep.subr.mxu0 0.0
    %179 = vmatpush1.msra.mxu0 %v41
    %180 = vmatprep.subr.mxu0 0.0
    %181 = vmatpush1.msra.mxu0 %v40
    %182 = vmatprep.subr.mxu0 0.0
    %183 = vmatpush1.msra.mxu0 %v39
    %184 = vmatprep.subr.mxu0 0.0
    %185 = vmatpush1.msra.mxu0 %v38
    %186 = vmatprep.subr.mxu0 0.0
    %187 = vmatpush1.msra.mxu0 %v37
    %188 = vmatprep.subr.mxu0 0.0
    %189 = vmatpush2.msra.mxu0 %v68
    %190 = vmatprep.subr.mxu0 0.0
    %191 = vmatpush2.msra.mxu0 %v67
    %192 = vmatprep.subr.mxu0 0.0
    %193 = vmatpush2.msra.mxu0 %v66
    %194 = vmatprep.subr.mxu0 0.0
    %195 = vmatpush2.msra.mxu0 %v65
    %196 = vmatprep.subr.mxu0 0.0
    %197 = vmatpush2.msra.mxu0 %v64
    %198 = vmatprep.subr.mxu0 0.0
    %199 = vmatpush2.msra.mxu0 %v63
    %200 = vmatprep.subr.mxu0 0.0
    %201 = vmatpush2.msra.mxu0 %v62
    %202 = vmatprep.subr.mxu0 0.0
    %203 = vmatpush2.msra.mxu0 %v61
    %204 = vmatprep.subr.mxu0 0.0
    %205 = vmatpush2.msra.mxu0 %v60
    %206 = vmatprep.subr.mxu0 0.0
    %207 = vmatpush2.msra.mxu0 %v59
    %208 = vmatprep.subr.mxu0 0.0
    %209 = vmatpush2.msra.mxu0 %v58
    %210 = vmatprep.subr.mxu0 0.0
    %211 = vmatpush2.msra.mxu0 %v57
    %212 = vmatprep.subr.mxu0 0.0
    %213 = vmatpush2.msra.mxu0 %v56
    %214 = vmatprep.subr.mxu0 0.0
    %215 = vmatpush2.msra.mxu0 %v55
    %216 = vmatprep.subr.mxu0 0.0
    %217 = vmatpush2.msra.mxu0 %v54
    %218 = vmatprep.subr.mxu0 0.0
    %219 = vmatpush2.msra.mxu0 %v53
    %220 = vmatprep.mubr.f32.mxu0 %v31
    %221 = vmatmul.mubr.f32.gmra.mxu0 %v30
    %v222 = vpop.f32.mrf.mxu0
    %v223 = vadd.f32 %v154, %v222
    %v224 = vpop.f32.mrf.mxu0
    %225 = vdwg.mxu0
    %226 = vmatprep.subr.mxu0 0.0
    %227 = vmatpush1.msra.mxu0 %v84
    %228 = vmatprep.subr.mxu0 0.0
    %229 = vmatpush1.msra.mxu0 %v83
    %230 = vmatprep.subr.mxu0 0.0
    %231 = vmatpush1.msra.mxu0 %v82
    %232 = vmatprep.subr.mxu0 0.0
    %233 = vmatpush1.msra.mxu0 %v81
    %234 = vmatprep.subr.mxu0 0.0
    %235 = vmatpush1.msra.mxu0 %v80
    %236 = vmatprep.subr.mxu0 0.0
    %237 = vmatpush1.msra.mxu0 %v79
    %238 = vmatprep.subr.mxu0 0.0
    %239 = vmatpush1.msra.mxu0 %v78
    %240 = vmatprep.subr.mxu0 0.0
    %241 = vmatpush1.msra.mxu0 %v77
    %242 = vmatprep.subr.mxu0 0.0
    %243 = vmatpush1.msra.mxu0 %v76
    %244 = vmatprep.subr.mxu0 0.0
    %245 = vmatpush1.msra.mxu0 %v75
    %246 = vmatprep.subr.mxu0 0.0
    %247 = vmatpush1.msra.mxu0 %v74
    %248 = vmatprep.subr.mxu0 0.0
    %249 = vmatpush1.msra.mxu0 %v73
    %250 = vmatprep.subr.mxu0 0.0
    %251 = vmatpush1.msra.mxu0 %v72
    %252 = vmatprep.subr.mxu0 0.0
    %253 = vmatpush1.msra.mxu0 %v71
    %254 = vmatprep.subr.mxu0 0.0
    %255 = vmatpush1.msra.mxu0 %v70
    %256 = vmatprep.subr.mxu0 0.0
    %257 = vmatpush1.msra.mxu0 %v69
    %258 = vmatprep.subr.mxu0 0.0
    %259 = vmatpush2.msra.mxu0 %v100
    %260 = vmatprep.subr.mxu0 0.0
    %261 = vmatpush2.msra.mxu0 %v99
    %262 = vmatprep.subr.mxu0 0.0
    %263 = vmatpush2.msra.mxu0 %v98
    %264 = vmatprep.subr.mxu0 0.0
    %265 = vmatpush2.msra.mxu0 %v97
    %266 = vmatprep.subr.mxu0 0.0
    %267 = vmatpush2.msra.mxu0 %v96
    %268 = vmatprep.subr.mxu0 0.0
    %269 = vmatpush2.msra.mxu0 %v95
    %270 = vmatprep.subr.mxu0 0.0
    %271 = vmatpush2.msra.mxu0 %v94
    %272 = vmatprep.subr.mxu0 0.0
    %273 = vmatpush2.msra.mxu0 %v93
    %274 = vmatprep.subr.mxu0 0.0
    %275 = vmatpush2.msra.mxu0 %v92
    %276 = vmatprep.subr.mxu0 0.0
    %277 = vmatpush2.msra.mxu0 %v91
    %278 = vmatprep.subr.mxu0 0.0
    %279 = vmatpush2.msra.mxu0 %v90
    %280 = vmatprep.subr.mxu0 0.0
    %281 = vmatpush2.msra.mxu0 %v89
    %282 = vmatprep.subr.mxu0 0.0
    %283 = vmatpush2.msra.mxu0 %v88
    %284 = vmatprep.subr.mxu0 0.0
    %285 = vmatpush2.msra.mxu0 %v87
    %286 = vmatprep.subr.mxu0 0.0
    %287 = vmatpush2.msra.mxu0 %v86
    %288 = vmatprep.subr.mxu0 0.0
    %289 = vmatpush2.msra.mxu0 %v85
    %290 = vmatprep.mubr.f32.mxu0 %v33
    %291 = vmatmul.mubr.f32.gmra.mxu0 %v32
    %v292 = vpop.f32.mrf.mxu0
    %v293 = vadd.f32 %v223, %v292
    %v294 = vpop.f32.mrf.mxu0
    %295 = vdwg.mxu0
    %296 = vmatprep.subr.mxu0 0.0
    %297 = vmatpush1.msra.mxu0 %v116
    %298 = vmatprep.subr.mxu0 0.0
    %299 = vmatpush1.msra.mxu0 %v115
    %300 = vmatprep.subr.mxu0 0.0
    %301 = vmatpush1.msra.mxu0 %v114
    %302 = vmatprep.subr.mxu0 0.0
    %303 = vmatpush1.msra.mxu0 %v113
    %304 = vmatprep.subr.mxu0 0.0
    %305 = vmatpush1.msra.mxu0 %v112
    %306 = vmatprep.subr.mxu0 0.0
    %307 = vmatpush1.msra.mxu0 %v111
    %308 = vmatprep.subr.mxu0 0.0
    %309 = vmatpush1.msra.mxu0 %v110
    %310 = vmatprep.subr.mxu0 0.0
    %311 = vmatpush1.msra.mxu0 %v109
    %312 = vmatprep.subr.mxu0 0.0
    %313 = vmatpush1.msra.mxu0 %v108
    %314 = vmatprep.subr.mxu0 0.0
    %315 = vmatpush1.msra.mxu0 %v107
    %316 = vmatprep.subr.mxu0 0.0
    %317 = vmatpush1.msra.mxu0 %v106
    %318 = vmatprep.subr.mxu0 0.0
    %319 = vmatpush1.msra.mxu0 %v105
    %320 = vmatprep.subr.mxu0 0.0
    %321 = vmatpush1.msra.mxu0 %v104
    %322 = vmatprep.subr.mxu0 0.0
    %323 = vmatpush1.msra.mxu0 %v103
    %324 = vmatprep.subr.mxu0 0.0
    %325 = vmatpush1.msra.mxu0 %v102
    %326 = vmatprep.subr.mxu0 0.0
    %327 = vmatpush1.msra.mxu0 %v101
    %328 = vmatprep.subr.mxu0 0.0
    %329 = vmatpush2.msra.mxu0 %v132
    %330 = vmatprep.subr.mxu0 0.0
    %331 = vmatpush2.msra.mxu0 %v131
    %332 = vmatprep.subr.mxu0 0.0
    %333 = vmatpush2.msra.mxu0 %v130
    %334 = vmatprep.subr.mxu0 0.0
    %335 = vmatpush2.msra.mxu0 %v129
    %336 = vmatprep.subr.mxu0 0.0
    %337 = vmatpush2.msra.mxu0 %v128
    %338 = vmatprep.subr.mxu0 0.0
    %339 = vmatpush2.msra.mxu0 %v127
    %340 = vmatprep.subr.mxu0 0.0
    %341 = vmatpush2.msra.mxu0 %v126
    %342 = vmatprep.subr.mxu0 0.0
    %343 = vmatpush2.msra.mxu0 %v125
    %344 = vmatprep.subr.mxu0 0.0
    %345 = vmatpush2.msra.mxu0 %v124
    %346 = vmatprep.subr.mxu0 0.0
    %347 = vmatpush2.msra.mxu0 %v123
    %348 = vmatprep.subr.mxu0 0.0
    %349 = vmatpush2.msra.mxu0 %v122
    %350 = vmatprep.subr.mxu0 0.0
    %351 = vmatpush2.msra.mxu0 %v121
    %352 = vmatprep.subr.mxu0 0.0
    %353 = vmatpush2.msra.mxu0 %v120
    %354 = vmatprep.subr.mxu0 0.0
    %355 = vmatpush2.msra.mxu0 %v119
    %356 = vmatprep.subr.mxu0 0.0
    %357 = vmatpush2.msra.mxu0 %v118
    %358 = vmatprep.subr.mxu0 0.0
    %359 = vmatpush2.msra.mxu0 %v117
    %360 = vmatprep.mubr.f32.mxu0 %v35
    %361 = vmatmul.mubr.f32.gmra.mxu0 %v34
    %v362 = vpop.f32.mrf.mxu0
    %v363 = vadd.f32 %v293, %v362
    %v364 = vpop.f32.mrf.mxu0
    %365 = vdwg.mxu0
    %366 = vmatprep.subr.mxu0 0.0
    %367 = vmatpush1.msra.mxu0 %v148
    %368 = vmatprep.subr.mxu0 0.0
    %369 = vmatpush1.msra.mxu0 %v147
    %370 = vmatprep.subr.mxu0 0.0
    %371 = vmatpush1.msra.mxu0 %v146
    %372 = vmatprep.subr.mxu0 0.0
    %373 = vmatpush1.msra.mxu0 %v145
    %374 = vmatprep.subr.mxu0 0.0
    %375 = vmatpush1.msra.mxu0 %v144
    %376 = vmatprep.subr.mxu0 0.0
    %377 = vmatpush1.msra.mxu0 %v143
    %378 = vmatprep.subr.mxu0 0.0
    %379 = vmatpush1.msra.mxu0 %v142
    %380 = vmatprep.subr.mxu0 0.0
    %381 = vmatpush1.msra.mxu0 %v141
    %382 = vmatprep.subr.mxu0 0.0
    %383 = vmatpush1.msra.mxu0 %v140
    %384 = vmatprep.subr.mxu0 0.0
    %385 = vmatpush1.msra.mxu0 %v139
    %386 = vmatprep.subr.mxu0 0.0
    %387 = vmatpush1.msra.mxu0 %v138
    %388 = vmatprep.subr.mxu0 0.0
    %389 = vmatpush1.msra.mxu0 %v137
    %390 = vmatprep.subr.mxu0 0.0
    %391 = vmatpush1.msra.mxu0 %v136
    %392 = vmatprep.subr.mxu0 0.0
    %393 = vmatpush1.msra.mxu0 %v135
    %394 = vmatprep.subr.mxu0 0.0
    %395 = vmatpush1.msra.mxu0 %v134
    %396 = vmatprep.subr.mxu0 0.0
    %397 = vmatpush1.msra.mxu0 %v133
    %398 = vmatprep.subr.mxu0 0.0
    %399 = vmatpush2.msra.mxu0 0.0
    %400 = vmatprep.subr.mxu0 0.0
    %401 = vmatpush2.msra.mxu0 0.0
    %402 = vmatprep.subr.mxu0 0.0
    %403 = vmatpush2.msra.mxu0 0.0
    %404 = vmatprep.subr.mxu0 0.0
    %405 = vmatpush2.msra.mxu0 0.0
    %406 = vmatprep.subr.mxu0 0.0
    %407 = vmatpush2.msra.mxu0 0.0
    %408 = vmatprep.subr.mxu0 0.0
    %409 = vmatpush2.msra.mxu0 0.0
    %410 = vmatprep.subr.mxu0 0.0
    %411 = vmatpush2.msra.mxu0 0.0
    %412 = vmatprep.subr.mxu0 0.0
    %413 = vmatpush2.msra.mxu0 0.0
    %414 = vmatprep.subr.mxu0 0.0
    %415 = vmatpush2.msra.mxu0 0.0
    %416 = vmatprep.subr.mxu0 0.0
    %417 = vmatpush2.msra.mxu0 0.0
    %418 = vmatprep.subr.mxu0 0.0
    %419 = vmatpush2.msra.mxu0 0.0
    %420 = vmatprep.subr.mxu0 0.0
    %421 = vmatpush2.msra.mxu0 0.0
    %422 = vmatprep.subr.mxu0 0.0
    %423 = vmatpush2.msra.mxu0 0.0
    %424 = vmatprep.subr.mxu0 0.0
    %425 = vmatpush2.msra.mxu0 0.0
    %426 = vmatprep.subr.mxu0 0.0
    %427 = vmatpush2.msra.mxu0 0.0
    %428 = vmatprep.subr.mxu0 0.0
    %429 = vmatpush2.msra.mxu0 0.0
    %430 = vmatprep.mubr.f32.mxu0 0.0
    %431 = vmatmul.mubr.f32.gmra.mxu0 %v36
    %v432 = vpop.f32.mrf.mxu0
    %v433 = vadd.f32 %v363, %v432
    %v434 = vpop.f32.mrf.mxu0
    %435 = vdwg.mxu0
    %v436 = vmax.f32 %v433, 0.0
    %v437 = vld [vmem:[%s4] sm:$0xff]
    %v438 = vld [vmem:[%s4 + $0x8] sm:$0xff]
    %v439 = vld [vmem:[%s4 + $0x10] sm:$0xff]
    %v440 = vld [vmem:[%s4 + $0x18] sm:$0xff]
    %v441 = vld [vmem:[%s4 + $0x20] sm:$0xff]
    %v442 = vld [vmem:[%s4 + $0x28] sm:$0xff]
    %v443 = vld [vmem:[%s4 + $0x30] sm:$0xff]
    %v444 = vld [vmem:[%s4 + $0x38] sm:$0xff]
    %v445 = vld [vmem:[%s5] sm:$0x1]
    %v447 = vlaneseq
    %v448 = vshrl.u32 %v447, 7
    %v449 = vsub.s32 0, %v448
    %v450 = vrot.slane %v445, %v449
    %vm452 = vcmask 523264
    %v454 = vsel %vm452, %v436, 0
    %456 = vmatprep.subr.mxu0 0.0
    %457 = vmatpush1.msra.mxu0 0.0
    %458 = vmatprep.subr.mxu0 0.0
    %459 = vmatpush1.msra.mxu0 0.0
    %460 = vmatprep.subr.mxu0 0.0
    %461 = vmatpush1.msra.mxu0 0.0
    %462 = vmatprep.subr.mxu0 0.0
    %463 = vmatpush1.msra.mxu0 0.0
    %464 = vmatprep.subr.mxu0 0.0
    %465 = vmatpush1.msra.mxu0 0.0
    %466 = vmatprep.subr.mxu0 0.0
    %467 = vmatpush1.msra.mxu0 0.0
    %468 = vmatprep.subr.mxu0 0.0
    %469 = vmatpush1.msra.mxu0 0.0
    %470 = vmatprep.subr.mxu0 0.0
    %471 = vmatpush1.msra.mxu0 0.0
    %472 = vmatprep.subr.mxu0 0.0
    %473 = vmatpush1.msra.mxu0 %v444
    %474 = vmatprep.subr.mxu0 0.0
    %475 = vmatpush1.msra.mxu0 %v443
    %476 = vmatprep.subr.mxu0 0.0
    %477 = vmatpush1.msra.mxu0 %v442
    %478 = vmatprep.subr.mxu0 0.0
    %479 = vmatpush1.msra.mxu0 %v441
    %480 = vmatprep.subr.mxu0 0.0
    %481 = vmatpush1.msra.mxu0 %v440
    %482 = vmatprep.subr.mxu0 0.0
    %483 = vmatpush1.msra.mxu0 %v439
    %484 = vmatprep.subr.mxu0 0.0
    %485 = vmatpush1.msra.mxu0 %v438
    %486 = vmatprep.subr.mxu0 0.0
    %487 = vmatpush1.msra.mxu0 %v437
    %488 = vmatprep.subr.mxu0 0.0
    %489 = vmatpush2.msra.mxu0 0.0
    %490 = vmatprep.subr.mxu0 0.0
    %491 = vmatpush2.msra.mxu0 0.0
    %492 = vmatprep.subr.mxu0 0.0
    %493 = vmatpush2.msra.mxu0 0.0
    %494 = vmatprep.subr.mxu0 0.0
    %495 = vmatpush2.msra.mxu0 0.0
    %496 = vmatprep.subr.mxu0 0.0
    %497 = vmatpush2.msra.mxu0 0.0
    %498 = vmatprep.subr.mxu0 0.0
    %499 = vmatpush2.msra.mxu0 0.0
    %500 = vmatprep.subr.mxu0 0.0
    %501 = vmatpush2.msra.mxu0 0.0
    %502 = vmatprep.subr.mxu0 0.0
    %503 = vmatpush2.msra.mxu0 0.0
    %504 = vmatprep.subr.mxu0 0.0
    %505 = vmatpush2.msra.mxu0 0.0
    %506 = vmatprep.subr.mxu0 0.0
    %507 = vmatpush2.msra.mxu0 0.0
    %508 = vmatprep.subr.mxu0 0.0
    %509 = vmatpush2.msra.mxu0 0.0
    %510 = vmatprep.subr.mxu0 0.0
    %511 = vmatpush2.msra.mxu0 0.0
    %512 = vmatprep.subr.mxu0 0.0
    %513 = vmatpush2.msra.mxu0 0.0
    %514 = vmatprep.subr.mxu0 0.0
    %515 = vmatpush2.msra.mxu0 0.0
    %516 = vmatprep.subr.mxu0 0.0
    %517 = vmatpush2.msra.mxu0 0.0
    %518 = vmatprep.subr.mxu0 0.0
    %519 = vmatpush2.msra.mxu0 0.0
    %520 = vmatprep.mubr.f32.mxu0 0.0
    %521 = vmatmul.mubr.f32.gmra.mxu0 %v454
    %v522 = vpop.f32.mrf.mxu0
    %v523 = vadd.f32 %v450, %v522
    %v524 = vpop.f32.mrf.mxu0
    %525 = vdwg.mxu0
    %v526 = vmax.f32 %v523, 0.0
    %v527 = vadd.f32 %v526, %v436
    %v528 = vld [vmem:[%s1] sm:$0xff]
    %vm529 = vcmp.ge.f32.partialorder %v528, 0.3
    %v530 = vmul.f32 %v527, 1.4285715
    %v531 = vsel %vm529, %v530, 0.0
    %v532 = vld [vmem:[%s6] sm:$0xff]
    %v533 = vld [vmem:[%s6 + $0x8] sm:$0xff]
    %v534 = vld [vmem:[%s6 + $0x10] sm:$0xff]
    %v535 = vld [vmem:[%s6 + $0x18] sm:$0xff]
    %v536 = vld [vmem:[%s6 + $0x20] sm:$0xff]
    %v537 = vld [vmem:[%s6 + $0x28] sm:$0xff]
    %v538 = vld [vmem:[%s6 + $0x30] sm:$0xff]
    %v539 = vld [vmem:[%s6 + $0x38] sm:$0xff]
    %v540 = vld [vmem:[%s7] sm:$0x1]
    %v542 = vlaneseq
    %v543 = vshrl.u32 %v542, 7
    %v544 = vsub.s32 0, %v543
    %v545 = vrot.slane %v540, %v544
    %v548 = vsel %vm452, %v531, 0
    %550 = vmatprep.subr.mxu0 0.0
    %551 = vmatpush1.msra.mxu0 0.0
    %552 = vmatprep.subr.mxu0 0.0
    %553 = vmatpush1.msra.mxu0 0.0
    %554 = vmatprep.subr.mxu0 0.0
    %555 = vmatpush1.msra.mxu0 0.0
    %556 = vmatprep.subr.mxu0 0.0
    %557 = vmatpush1.msra.mxu0 0.0
    %558 = vmatprep.subr.mxu0 0.0
    %559 = vmatpush1.msra.mxu0 0.0
    %560 = vmatprep.subr.mxu0 0.0
    %561 = vmatpush1.msra.mxu0 0.0
    %562 = vmatprep.subr.mxu0 0.0
    %563 = vmatpush1.msra.mxu0 0.0
    %564 = vmatprep.subr.mxu0 0.0
    %565 = vmatpush1.msra.mxu0 0.0
    %566 = vmatprep.subr.mxu0 0.0
    %567 = vmatpush1.msra.mxu0 %v539
    %568 = vmatprep.subr.mxu0 0.0
    %569 = vmatpush1.msra.mxu0 %v538
    %570 = vmatprep.subr.mxu0 0.0
    %571 = vmatpush1.msra.mxu0 %v537
    %572 = vmatprep.subr.mxu0 0.0
    %573 = vmatpush1.msra.mxu0 %v536
    %574 = vmatprep.subr.mxu0 0.0
    %575 = vmatpush1.msra.mxu0 %v535
    %576 = vmatprep.subr.mxu0 0.0
    %577 = vmatpush1.msra.mxu0 %v534
    %578 = vmatprep.subr.mxu0 0.0
    %579 = vmatpush1.msra.mxu0 %v533
    %580 = vmatprep.subr.mxu0 0.0
    %581 = vmatpush1.msra.mxu0 %v532
    %582 = vmatprep.subr.mxu0 0.0
    %583 = vmatpush2.msra.mxu0 0.0
    %584 = vmatprep.subr.mxu0 0.0
    %585 = vmatpush2.msra.mxu0 0.0
    %586 = vmatprep.subr.mxu0 0.0
    %587 = vmatpush2.msra.mxu0 0.0
    %588 = vmatprep.subr.mxu0 0.0
    %589 = vmatpush2.msra.mxu0 0.0
    %590 = vmatprep.subr.mxu0 0.0
    %591 = vmatpush2.msra.mxu0 0.0
    %592 = vmatprep.subr.mxu0 0.0
    %593 = vmatpush2.msra.mxu0 0.0
    %594 = vmatprep.subr.mxu0 0.0
    %595 = vmatpush2.msra.mxu0 0.0
    %596 = vmatprep.subr.mxu0 0.0
    %597 = vmatpush2.msra.mxu0 0.0
    %598 = vmatprep.subr.mxu0 0.0
    %599 = vmatpush2.msra.mxu0 0.0
    %600 = vmatprep.subr.mxu0 0.0
    %601 = vmatpush2.msra.mxu0 0.0
    %602 = vmatprep.subr.mxu0 0.0
    %603 = vmatpush2.msra.mxu0 0.0
    %604 = vmatprep.subr.mxu0 0.0
    %605 = vmatpush2.msra.mxu0 0.0
    %606 = vmatprep.subr.mxu0 0.0
    %607 = vmatpush2.msra.mxu0 0.0
    %608 = vmatprep.subr.mxu0 0.0
    %609 = vmatpush2.msra.mxu0 0.0
    %610 = vmatprep.subr.mxu0 0.0
    %611 = vmatpush2.msra.mxu0 0.0
    %612 = vmatprep.subr.mxu0 0.0
    %613 = vmatpush2.msra.mxu0 0.0
    %614 = vmatprep.mubr.f32.mxu0 0.0
    %615 = vmatmul.mubr.f32.gmra.mxu0 %v548
    %v616 = vpop.f32.mrf.mxu0
    %v617 = vadd.f32 %v545, %v616
    %v618 = vpop.f32.mrf.mxu0
    %619 = vdwg.mxu0
    %620 = vst [vmem:[#allocation2] sm:$0xff] %v617
    // Predicated region
    $region34: #{tpu_custom_call.1} parent=1 // pred_check
      _
    $region35: #{tpu_custom_call.1} parent=1 // pred_check_branch
      %622 = sbr.rel (0) target = $region37
    $region36: #{tpu_custom_call.1} parent=1 // pred_region
      %s624 = ssub.s32 128, 128
      %625 = vsyncadd [#allocation3], %s624
      %s627 = sshll.u32 [#allocation2], 4
      %s628 = int_to_ptr.vmem [resolvable:$true] %s627
      %630 = dma.vmem_to_hbm [thread:$0]  %s628, 128, %s8, [#allocation3]
    $region37: #{tpu_custom_call.1} parent=1 // pred_fallthru
      _
    // Predicated region
    $region38: #{tpu_custom_call.1} parent=1 // pred_check
      _
    $region39: #{tpu_custom_call.1} parent=1 // pred_check_branch
      %632 = sbr.rel (0) target = $region41
    $region40: #{tpu_custom_call.1} parent=1 // pred_region
      %633 = dma.done [#allocation3], 128
    $region41: #{tpu_custom_call.1} parent=1 // pred_fallthru
      _
    %634 = vsyncpa [#allocation3], 1

</llo_original>
